<compile_context>
chip_gen: v7x
topology: tpu7x:2x2x1
jax: 0.10.0
libtpu: 0.0.40
codegen_flags: <defaults>
</compile_context>

<pallas_src>
import jax
import jax.numpy as jnp
import numpy as np
from jax.experimental import pallas as pl
from jax.experimental.pallas import tpu as pltpu


# ----------------------------------------------------------------------------
# Pallas kernel: interpolation, discriminator hidden layer, analytic gradient
# norm via the Gram identity, gradient penalty, and the final WGAN-GP loss.
# ----------------------------------------------------------------------------
def _wgan_gp_loss_kernel(real_ref, fake_ref, alpha_ref,          # SMEM [B]
                         xr_ref, xf_ref,                         # VMEM [B, D]
                         w1_ref, b1_ref, w2t_ref, gram_ref,      # VMEM params
                         loss_ref,                               # SMEM (1, 1)
                         x_scratch):                             # VMEM [B, D]
    B = xr_ref.shape[0]

    # loss_d = mean(fake_output - real_output)  -- pure scalar math in SMEM.
    acc = jnp.float32(0.0)
    for i in range(B):
        acc = acc + (fake_ref[i] - real_ref[i])
    loss_d = acc / jnp.float32(B)

    # interpolates = real + alpha * (fake - real); alpha is a per-row SMEM
    # scalar splat against lane-dense [1, D] rows (f32 math, native inputs).
    for i in range(B):
        xr_i = xr_ref[i:i + 1, :].astype(jnp.float32)
        xf_i = xf_ref[i:i + 1, :].astype(jnp.float32)
        x_scratch[i:i + 1, :] = xr_i + alpha_ref[i] * (xf_i - xr_i)

    # Hidden layer: the single big D-contraction, bf16 operands on the MXU
    # with f32 accumulation; elementwise stays f32 (EUP tanh).
    x_bf16 = x_scratch[...].astype(jnp.bfloat16)
    h = jnp.dot(x_bf16, w1_ref[...], preferred_element_type=jnp.float32)
    h = h + b1_ref[...]                                   # [B, HP] f32
    a = jnp.tanh(h)

    # gh = dD/dh = (1 - a^2) * w2^T                        [B, HP]
    # Padded hidden units have w2 = 0, so they contribute exactly zero.
    gh = (1.0 - a * a) * w2t_ref[...]

    # ||dD/dx||^2 per row via the Gram identity (G = W1^T W1, exact f32):
    #   ||gh @ W1^T||^2 = rowsum((gh @ G) * gh)    -- no [B, D] gradient.
    ghG = jnp.dot(gh, gram_ref[...], preferred_element_type=jnp.float32)
    sq = jnp.sum(ghG * gh, axis=1, keepdims=True)          # [B, 1]
    slopes = jnp.sqrt(sq)
    gp = jnp.mean((slopes - 1.0) ** 2)

    loss_ref[0, 0] = loss_d + 10.0 * gp


# ----------------------------------------------------------------------------
# Wrapper: flattening / parameter-only preprocessing (padding, bf16 weight
# copy, Gram matrix) + the pallas_call.
# ----------------------------------------------------------------------------
def discriminator_loss(real_output, fake_output, alpha,
                       real_images, generated_images, w1, b1, w2,
                       *, hidden_pad=128):
    B = real_images.shape[0]
    D = int(np.prod(real_images.shape[1:]))
    HID = w1.shape[1]
    HP = max(hidden_pad, HID)                 # lane-dense hidden width

    # Flatten in torch .view(B, -1) order; keep native dtype (no f32 upcast).
    xr = real_images.reshape(B, D)
    xf = generated_images.reshape(B, D)

    # Parameter-only (data-independent) preprocessing:
    #  * zero-pad the hidden dim to HP  (padded units are exact zeros),
    #  * bf16 copy of W1 for the MXU,
    #  * exact f32 Gram matrix G = W1^T W1 for the gradient-norm identity.
    w1f = w1.astype(jnp.float32)
    w1p = jnp.zeros((D, HP), jnp.float32).at[:, :HID].set(w1f)
    b1p = jnp.zeros((1, HP), jnp.float32).at[:, :HID].set(
        b1.reshape(1, HID).astype(jnp.float32))
    w2tp = jnp.zeros((1, HP), jnp.float32).at[:, :HID].set(
        w2.reshape(1, HID).astype(jnp.float32))
    gram = jnp.dot(w1p.T, w1p, preferred_element_type=jnp.float32)  # [HP, HP]
    w1p_bf16 = w1p.astype(jnp.bfloat16)

    smem = pl.BlockSpec(memory_space=pltpu.MemorySpace.SMEM)
    vmem = pl.BlockSpec(memory_space=pltpu.MemorySpace.VMEM)

    loss = pl.pallas_call(
        _wgan_gp_loss_kernel,
        out_shape=jax.ShapeDtypeStruct((1, 1), jnp.float32),
        in_specs=[smem, smem, smem,              # real, fake, alpha
                  vmem, vmem,                    # xr, xf
                  vmem, vmem, vmem, vmem],       # w1 (bf16), b1, w2^T, Gram
        out_specs=smem,
        scratch_shapes=[pltpu.VMEM((B, D), jnp.float32)],
    )(real_output.reshape(B).astype(jnp.float32),
      fake_output.reshape(B).astype(jnp.float32),
      alpha.reshape(B).astype(jnp.float32),
      xr, xf, w1p_bf16, b1p, w2tp, gram)
    return loss[0, 0]


# ----------------------------------------------------------------------------
# Pure-JAX reference (uses jax.grad for the autograd.grad step), f32 end-to-end.
# ----------------------------------------------------------------------------
def disc_apply(x_flat, w1, b1, w2, b2):
    return jnp.tanh(x_flat @ w1 + b1) @ w2 + b2            # [B, 1]


def ref_loss(real_output, fake_output, alpha, real_images, generated_images,
             w1, b1, w2, b2):
    B = real_images.shape[0]
    xr = real_images.reshape(B, -1)
    xf = generated_images.reshape(B, -1)
    loss_d = jnp.mean(fake_output - real_output)
    x = xr + alpha.reshape(B, 1) * (xf - xr)

    def d_sum(xi):
        return disc_apply(xi[None, :], w1, b1, w2, b2).sum()

    grads = jax.vmap(jax.grad(d_sum))(x)                   # [B, D]
    slopes = jnp.sqrt(jnp.sum(grads ** 2, axis=1))
    gp = jnp.mean((slopes - 1.0) ** 2)
    return loss_d + 10.0 * gp


if __name__ == "__main__":
    key = jax.random.PRNGKey(0)
    kr, kf, ka, k1, kb1, k2 = jax.random.split(key, 6)

    B, C, H, W = 2, 4, 16, 16
    D = C * H * W
    HID = 32

    real_images = jax.random.normal(kr, (B, C, H, W), jnp.float32)
    generated_images = jax.random.normal(kf, (B, C, H, W), jnp.float32)
    # torch.rand((batch_size, 1, 1, 1)) equivalent; passed in (deterministic)
    # instead of being drawn inside the kernel so the reference can match it.
    alpha = jax.random.uniform(ka, (B, 1, 1, 1), jnp.float32)

    # Deterministic synthetic discriminator parameters.
    w1 = jax.random.normal(k1, (D, HID), jnp.float32) / jnp.sqrt(D)
    b1 = jax.random.normal(kb1, (1, HID), jnp.float32) * 0.1
    w2 = jax.random.normal(k2, (HID, 1), jnp.float32) / jnp.sqrt(HID)
    b2 = jnp.float32(0.05)

    # real_output / fake_output are inputs to the loss module in PyTorch;
    # compute them with the same synthetic discriminator.
    real_output = disc_apply(real_images.reshape(B, -1), w1, b1, w2, b2)
    fake_output = disc_apply(generated_images.reshape(B, -1), w1, b1, w2, b2)

    loss = discriminator_loss(real_output, fake_output, alpha,
                              real_images, generated_images, w1, b1, w2)
    loss = jax.block_until_ready(loss)

    ref = jax.block_until_ready(
        ref_loss(real_output, fake_output, alpha, real_images,
                 generated_images, w1, b1, w2, b2))

    np.testing.assert_allclose(np.asarray(loss), np.asarray(ref),
                               rtol=5e-2, atol=5e-2)
    print("KERNEL_OK")
</pallas_src>

<mosaic_0001>
module attributes {stable_mosaic.version = 11 : i64} {
  func.func @_wgan_gp_loss_kernel(%arg0: memref<2xf32, #tpu.memory_space<smem>>, %arg1: memref<2xf32, #tpu.memory_space<smem>>, %arg2: memref<2xf32, #tpu.memory_space<smem>>, %arg3: memref<2x1024xf32, #tpu.memory_space<vmem>>, %arg4: memref<2x1024xf32, #tpu.memory_space<vmem>>, %arg5: memref<1024x128xbf16, #tpu.memory_space<vmem>>, %arg6: memref<1x128xf32, #tpu.memory_space<vmem>>, %arg7: memref<1x128xf32, #tpu.memory_space<vmem>>, %arg8: memref<128x128xf32, #tpu.memory_space<vmem>>, %arg9: memref<1x1xf32, #tpu.memory_space<smem>>, %arg10: memref<2x1024xf32, #tpu.memory_space<vmem>>) attributes {dimension_semantics = [], scalar_prefetch = 0 : i64, scratch_operands = 1 : i64, tpu.core_type = #tpu.core_type<tc>} {
    %c0 = arith.constant 0 : index
    %0 = memref.load %arg1[%c0] : memref<2xf32, #tpu.memory_space<smem>>
    %c0_0 = arith.constant 0 : index
    %1 = memref.load %arg0[%c0_0] : memref<2xf32, #tpu.memory_space<smem>>
    %2 = arith.subf %0, %1 : f32
    %cst = arith.constant 0.000000e+00 : f32
    %3 = arith.addf %cst, %2 : f32
    %c1 = arith.constant 1 : index
    %4 = memref.load %arg1[%c1] : memref<2xf32, #tpu.memory_space<smem>>
    %c1_1 = arith.constant 1 : index
    %5 = memref.load %arg0[%c1_1] : memref<2xf32, #tpu.memory_space<smem>>
    %6 = arith.subf %4, %5 : f32
    %7 = arith.addf %3, %6 : f32
    %cst_2 = arith.constant 2.000000e+00 : f32
    %8 = arith.divf %7, %cst_2 : f32
    %c0_3 = arith.constant 0 : index
    %c0_4 = arith.constant 0 : index
    %9 = vector.load %arg3[%c0_3, %c0_4] : memref<2x1024xf32, #tpu.memory_space<vmem>>, vector<1x1024xf32>
    %c0_5 = arith.constant 0 : index
    %c0_6 = arith.constant 0 : index
    %10 = vector.load %arg4[%c0_5, %c0_6] : memref<2x1024xf32, #tpu.memory_space<vmem>>, vector<1x1024xf32>
    %c0_7 = arith.constant 0 : index
    %11 = memref.load %arg2[%c0_7] : memref<2xf32, #tpu.memory_space<smem>>
    %12 = arith.subf %10, %9 : vector<1x1024xf32>
    %13 = vector.broadcast %11 : f32 to vector<1x1024xf32>
    %14 = arith.mulf %13, %12 : vector<1x1024xf32>
    %15 = arith.addf %9, %14 : vector<1x1024xf32>
    %c0_8 = arith.constant 0 : index
    %c0_9 = arith.constant 0 : index
    %16 = vector.load %arg10[%c0_8, %c0_9] : memref<2x1024xf32, #tpu.memory_space<vmem>>, vector<1x1024xf32>
    tpu.vector_store %arg10[%c0_8, %c0_9], %15 {strides = array<i32>} : memref<2x1024xf32, #tpu.memory_space<vmem>>, vector<1x1024xf32>,
    %c1_10 = arith.constant 1 : index
    %c0_11 = arith.constant 0 : index
    %17 = vector.load %arg3[%c1_10, %c0_11] : memref<2x1024xf32, #tpu.memory_space<vmem>>, vector<1x1024xf32>
    %c1_12 = arith.constant 1 : index
    %c0_13 = arith.constant 0 : index
    %18 = vector.load %arg4[%c1_12, %c0_13] : memref<2x1024xf32, #tpu.memory_space<vmem>>, vector<1x1024xf32>
    %c1_14 = arith.constant 1 : index
    %19 = memref.load %arg2[%c1_14] : memref<2xf32, #tpu.memory_space<smem>>
    %20 = arith.subf %18, %17 : vector<1x1024xf32>
    %21 = vector.broadcast %19 : f32 to vector<1x1024xf32>
    %22 = arith.mulf %21, %20 : vector<1x1024xf32>
    %23 = arith.addf %17, %22 : vector<1x1024xf32>
    %c1_15 = arith.constant 1 : index
    %c0_16 = arith.constant 0 : index
    %24 = vector.load %arg10[%c1_15, %c0_16] : memref<2x1024xf32, #tpu.memory_space<vmem>>, vector<1x1024xf32>
    tpu.vector_store %arg10[%c1_15, %c0_16], %23 {strides = array<i32>} : memref<2x1024xf32, #tpu.memory_space<vmem>>, vector<1x1024xf32>,
    %c0_17 = arith.constant 0 : index
    %c0_18 = arith.constant 0 : index
    %25 = vector.load %arg10[%c0_17, %c0_18] : memref<2x1024xf32, #tpu.memory_space<vmem>>, vector<2x1024xf32>
    %26 = arith.truncf %25 : vector<2x1024xf32> to vector<2x1024xbf16>
    %c0_19 = arith.constant 0 : index
    %c0_20 = arith.constant 0 : index
    %27 = vector.load %arg5[%c0_19, %c0_20] : memref<1024x128xbf16, #tpu.memory_space<vmem>>, vector<1024x128xbf16>
    %cst_21 = arith.constant dense<0.000000e+00> : vector<2x128xf32>
    %28 = tpu.matmul %26, %27, %cst_21 {dimension_numbers = #tpu.dot_dimension_numbers<[1], [0], [0], [1], [0, 0, 1, 1], [], []>} : vector<2x1024xbf16>, vector<1024x128xbf16>, vector<2x128xf32> -> vector<2x128xf32>
    %c0_22 = arith.constant 0 : index
    %c0_23 = arith.constant 0 : index
    %29 = vector.load %arg6[%c0_22, %c0_23] : memref<1x128xf32, #tpu.memory_space<vmem>>, vector<1x128xf32>
    %30 = vector.broadcast %29 : vector<1x128xf32> to vector<2x128xf32>
    %31 = arith.addf %28, %30 : vector<2x128xf32>
    %32 = math.tanh %31 : vector<2x128xf32>
    %33 = arith.mulf %32, %32 : vector<2x128xf32>
    %cst_24 = arith.constant 1.000000e+00 : f32
    %34 = vector.broadcast %cst_24 : f32 to vector<2x128xf32>
    %35 = arith.subf %34, %33 : vector<2x128xf32>
    %c0_25 = arith.constant 0 : index
    %c0_26 = arith.constant 0 : index
    %36 = vector.load %arg7[%c0_25, %c0_26] : memref<1x128xf32, #tpu.memory_space<vmem>>, vector<1x128xf32>
    %37 = vector.broadcast %36 : vector<1x128xf32> to vector<2x128xf32>
    %38 = arith.mulf %35, %37 : vector<2x128xf32>
    %c0_27 = arith.constant 0 : index
    %c0_28 = arith.constant 0 : index
    %39 = vector.load %arg8[%c0_27, %c0_28] : memref<128x128xf32, #tpu.memory_space<vmem>>, vector<128x128xf32>
    %cst_29 = arith.constant dense<0.000000e+00> : vector<2x128xf32>
    %40 = tpu.matmul %38, %39, %cst_29 {dimension_numbers = #tpu.dot_dimension_numbers<[1], [0], [0], [1], [0, 0, 1, 1], [], []>} : vector<2x128xf32>, vector<128x128xf32>, vector<2x128xf32> -> vector<2x128xf32>
    %41 = arith.mulf %40, %38 : vector<2x128xf32>
    %cst_30 = arith.constant dense<0.000000e+00> : vector<2xf32>
    %42 = vector.multi_reduction <add>, %41, %cst_30 [1] : vector<2x128xf32> to vector<2xf32>
    %43 = vector.shape_cast %42 : vector<2xf32> to vector<2x1xf32>
    %44 = math.sqrt %43 : vector<2x1xf32>
    %cst_31 = arith.constant 1.000000e+00 : f32
    %45 = vector.broadcast %cst_31 : f32 to vector<2x1xf32>
    %46 = arith.subf %44, %45 : vector<2x1xf32>
    %47 = arith.mulf %46, %46 : vector<2x1xf32>
    %48 = vector.shape_cast %47 : vector<2x1xf32> to vector<1x2x1xf32>
    %cst_32 = arith.constant dense<0.000000e+00> : vector<1xf32>
    %49 = vector.multi_reduction <add>, %48, %cst_32 [1, 2] : vector<1x2x1xf32> to vector<1xf32>
    %50 = vector.shape_cast %49 : vector<1xf32> to vector<1x1x1xf32>
    %51 = vector.extract %50[0, 0, 0] : f32 from vector<1x1x1xf32>
    %cst_33 = arith.constant 2.000000e+00 : f32
    %52 = arith.divf %51, %cst_33 : f32
    %cst_34 = arith.constant 1.000000e+01 : f32
    %53 = arith.mulf %cst_34, %52 : f32
    %54 = arith.addf %8, %53 : f32
    %c0_35 = arith.constant 0 : index
    %c0_36 = arith.constant 0 : index
    %55 = memref.load %arg9[%c0_35, %c0_36] : memref<1x1xf32, #tpu.memory_space<smem>>
    memref.store %54, %arg9[%c0_35, %c0_36] : memref<1x1xf32, #tpu.memory_space<smem>>
    return
  }
}

</mosaic_0001>

<llo_original>
// kernel: tpu_custom_call.1
$region0: #{tpu_custom_call.1}
  #allocation0 [shape = 'u32[]', space=smem, size = 0x4, offset = 0x4, fixed_abs, tag = 'smem constant byte address 0x4 - core index']
  #allocation1 [shape = 'u32[144,128]{1,0:T(1,128)}', space=vmem, size = 0x12000, scoped, tag = 'internal scratch']
  #allocation2 [shape = 'f32[2,1024]{1,0:T(2,128)}', space=vmem, size = 0x2000, scoped, tag = 'scratch operand']
  %s0 = inlined_call_operand.hbm [shape: f32[2], index: 0, kind: input, shape index: {}]
  %s1 = inlined_call_operand.vmem [shape: f32[2], index: 1, kind: input, shape index: {}]
  %s2 = inlined_call_operand.vmem [shape: f32[2], index: 2, kind: input, shape index: {}]
  %s3 = inlined_call_operand.hbm [shape: f32[2,1024], index: 3, kind: input, shape index: {}]
  %s4 = inlined_call_operand.hbm [shape: f32[2,1024], index: 4, kind: input, shape index: {}]
  %s5 = inlined_call_operand.hbm [shape: bf16[1024,128], index: 5, kind: input, shape index: {}]
  %s6 = inlined_call_operand.vmem [shape: f32[1,128], index: 6, kind: input, shape index: {}]
  %s7 = inlined_call_operand.vmem [shape: f32[1,128], index: 7, kind: input, shape index: {}]
  %s8 = inlined_call_operand.hbm [shape: f32[128,128], index: 8, kind: input, shape index: {}]
  %s9 = inlined_call_operand.hbm [shape: f32[1,1], index: 9, kind: output, shape index: {}]
  %s10 = sld [smem:[#allocation0]]
  $region74: #{tpu_custom_call.1} parent=0
    _
  %s12 = ssub.s32 1, %s10
  %s13 = scalar_select 0, %s12, %s10
  $region1: #{tpu_custom_call.1} parent=0
    #allocation3 [shape = 'u8[512]{0}', space=smem, size = 0x200, scoped, tag = 'input window, operand 0, single buffered']
    #allocation4 [shape = 's32[1]{0}', space=sflag, size = 0x4, scoped, tag = 'scoped memory for tpu_custom_call.1']
    #allocation5 [shape = 's32[1]{0}', space=sflag, size = 0x4, scoped, tag = 'scoped memory for tpu_custom_call.1']
    #allocation6 [shape = 's32[1]{0}', space=sflag, size = 0x4, scoped, tag = 'scoped memory for tpu_custom_call.1']
    #allocation7 [shape = 's32[1]{0}', space=sflag, size = 0x4, scoped, tag = 'scoped memory for tpu_custom_call.1']
    #allocation8 [shape = 'u8[512]{0}', space=smem, size = 0x200, scoped, tag = 'input window, operand 1, single buffered']
    #allocation9 [shape = 'u8[512]{0}', space=smem, size = 0x200, scoped, tag = 'input window, operand 2, single buffered']
    #allocation10 [shape = 's32[1]{0}', space=sflag, size = 0x4, scoped, tag = 'scoped memory for tpu_custom_call.1']
    #allocation11 [shape = 'u8[8192]{0}', space=vmem, size = 0x2000, scoped, tag = 'input window, operand 3, single buffered']
    #allocation12 [shape = 'u8[8192]{0}', space=vmem, size = 0x2000, scoped, tag = 'input window, operand 4, single buffered']
    #allocation13 [shape = 's32[1]{0}', space=sflag, size = 0x4, scoped, tag = 'scoped memory for tpu_custom_call.1']
    #allocation14 [shape = 'u8[262144]{0}', space=vmem, size = 0x40000, scoped, tag = 'input window, operand 5, single buffered']
    #allocation15 [shape = 'u8[65536]{0}', space=vmem, size = 0x10000, scoped, tag = 'input window, operand 8, single buffered']
    #allocation16 [shape = 's32[1]{0}', space=sflag, size = 0x4, scoped, tag = 'scoped memory for tpu_custom_call.1']
    #allocation17 [shape = 'u8[512]{0}', space=smem, size = 0x200, scoped, tag = 'output window, operand 0, single buffered']
    %14 = vsyncpa [#allocation5], 0
    %15 = vsyncpa [#allocation7], 0
    %16 = vsyncpa [#allocation10], 0
    %17 = vsyncpa [#allocation4], 0
    %18 = vsyncpa [#allocation13], 0
    %19 = vsyncpa [#allocation16], 0
    %20 = vsyncpa [#allocation6], 0
    // Predicated region
    $region2: #{tpu_custom_call.1} parent=1 // pred_check
      _
    $region3: #{tpu_custom_call.1} parent=1 // pred_check_branch
      %22 = sbr.rel (0) target = $region5
    $region4: #{tpu_custom_call.1} parent=1 // pred_region
      %s24 = ssub.s32 16, 16
      %25 = vsyncadd [#allocation5], %s24
      %28 = dma.hbm_to_smem %s0, 16, [#allocation3], [#allocation5]
    $region5: #{tpu_custom_call.1} parent=1 // pred_fallthru
      _
    // Predicated region
    $region6: #{tpu_custom_call.1} parent=1 // pred_check
      _
    $region7: #{tpu_custom_call.1} parent=1 // pred_check_branch
      %30 = sbr.rel (0) target = $region9
    $region8: #{tpu_custom_call.1} parent=1 // pred_region
      %s32 = ssub.s32 16, 16
      %33 = vsyncadd [#allocation7], %s32
      %s35 = sshll.u32 %s1, 4
      %s36 = int_to_ptr.vmem [resolvable:$true] %s35
      %38 = dma.vmem_to_smem %s36, 16, [#allocation8], [#allocation7]
    $region9: #{tpu_custom_call.1} parent=1 // pred_fallthru
      _
    // Predicated region
    $region10: #{tpu_custom_call.1} parent=1 // pred_check
      _
    $region11: #{tpu_custom_call.1} parent=1 // pred_check_branch
      %40 = sbr.rel (0) target = $region13
    $region12: #{tpu_custom_call.1} parent=1 // pred_region
      %s42 = ssub.s32 16, 16
      %43 = vsyncadd [#allocation10], %s42
      %s45 = sshll.u32 %s2, 4
      %s46 = int_to_ptr.vmem [resolvable:$true] %s45
      %48 = dma.vmem_to_smem %s46, 16, [#allocation9], [#allocation10]
    $region13: #{tpu_custom_call.1} parent=1 // pred_fallthru
      _
    // Predicated region
    $region14: #{tpu_custom_call.1} parent=1 // pred_check
      _
    $region15: #{tpu_custom_call.1} parent=1 // pred_check_branch
      %50 = sbr.rel (0) target = $region17
    $region16: #{tpu_custom_call.1} parent=1 // pred_region
      %s52 = ssub.s32 256, 256
      %53 = vsyncadd [#allocation4], %s52
      %s55 = sshll.u32 [#allocation11], 4
      %s56 = int_to_ptr.vmem [resolvable:$true] %s55
      %58 = dma.hbm_to_vmem [thread:$0]  %s3, 256, %s56, [#allocation4]
    $region17: #{tpu_custom_call.1} parent=1 // pred_fallthru
      _
    // Predicated region
    $region18: #{tpu_custom_call.1} parent=1 // pred_check
      _
    $region19: #{tpu_custom_call.1} parent=1 // pred_check_branch
      %60 = sbr.rel (0) target = $region21
    $region20: #{tpu_custom_call.1} parent=1 // pred_region
      %s62 = ssub.s32 256, 256
      %63 = vsyncadd [#allocation13], %s62
      %s65 = sshll.u32 [#allocation12], 4
      %s66 = int_to_ptr.vmem [resolvable:$true] %s65
      %68 = dma.hbm_to_vmem [thread:$0]  %s4, 256, %s66, [#allocation13]
    $region21: #{tpu_custom_call.1} parent=1 // pred_fallthru
      _
    // Predicated region
    $region22: #{tpu_custom_call.1} parent=1 // pred_check
      _
    $region23: #{tpu_custom_call.1} parent=1 // pred_check_branch
      %70 = sbr.rel (0) target = $region25
    $region24: #{tpu_custom_call.1} parent=1 // pred_region
      %s72 = ssub.s32 8192, 8192
      %73 = vsyncadd [#allocation13], %s72
      %s74 = sshll.u32 [#allocation14], 4
      %s75 = int_to_ptr.vmem [resolvable:$true] %s74
      %80 = dma.hbm_to_vmem [thread:$0]  %s5, 8192, %s75, [#allocation13], 64, 64, 4
    $region25: #{tpu_custom_call.1} parent=1 // pred_fallthru
      _
    // Predicated region
    $region26: #{tpu_custom_call.1} parent=1 // pred_check
      _
    $region27: #{tpu_custom_call.1} parent=1 // pred_check_branch
      %82 = sbr.rel (0) target = $region29
    $region28: #{tpu_custom_call.1} parent=1 // pred_region
      _
    $region29: #{tpu_custom_call.1} parent=1 // pred_fallthru
      _
    // Predicated region
    $region30: #{tpu_custom_call.1} parent=1 // pred_check
      _
    $region31: #{tpu_custom_call.1} parent=1 // pred_check_branch
      %84 = sbr.rel (0) target = $region33
    $region32: #{tpu_custom_call.1} parent=1 // pred_region
      _
    $region33: #{tpu_custom_call.1} parent=1 // pred_fallthru
      _
    // Predicated region
    $region34: #{tpu_custom_call.1} parent=1 // pred_check
      _
    $region35: #{tpu_custom_call.1} parent=1 // pred_check_branch
      %86 = sbr.rel (0) target = $region37
    $region36: #{tpu_custom_call.1} parent=1 // pred_region
      %s88 = ssub.s32 2048, 2048
      %89 = vsyncadd [#allocation16], %s88
      %s90 = sshll.u32 [#allocation15], 4
      %s91 = int_to_ptr.vmem [resolvable:$true] %s90
      %96 = dma.hbm_to_vmem [thread:$0]  %s8, 2048, %s91, [#allocation16], 128, 128, 8
    $region37: #{tpu_custom_call.1} parent=1 // pred_fallthru
      _
    // Predicated region
    $region38: #{tpu_custom_call.1} parent=1 // pred_check
      _
    $region39: #{tpu_custom_call.1} parent=1 // pred_check_branch
      %98 = sbr.rel (0) target = $region41
    $region40: #{tpu_custom_call.1} parent=1 // pred_region
      %99 = dma.done [#allocation5], 16
    $region41: #{tpu_custom_call.1} parent=1 // pred_fallthru
      _
    // Predicated region
    $region42: #{tpu_custom_call.1} parent=1 // pred_check
      _
    $region43: #{tpu_custom_call.1} parent=1 // pred_check_branch
      %101 = sbr.rel (0) target = $region45
    $region44: #{tpu_custom_call.1} parent=1 // pred_region
      %102 = dma.done [#allocation7], 16
    $region45: #{tpu_custom_call.1} parent=1 // pred_fallthru
      _
    // Predicated region
    $region46: #{tpu_custom_call.1} parent=1 // pred_check
      _
    $region47: #{tpu_custom_call.1} parent=1 // pred_check_branch
      %104 = sbr.rel (0) target = $region49
    $region48: #{tpu_custom_call.1} parent=1 // pred_region
      %105 = dma.done [#allocation10], 16
    $region49: #{tpu_custom_call.1} parent=1 // pred_fallthru
      _
    // Predicated region
    $region50: #{tpu_custom_call.1} parent=1 // pred_check
      _
    $region51: #{tpu_custom_call.1} parent=1 // pred_check_branch
      %107 = sbr.rel (0) target = $region53
    $region52: #{tpu_custom_call.1} parent=1 // pred_region
      %108 = dma.done [#allocation4], 256
    $region53: #{tpu_custom_call.1} parent=1 // pred_fallthru
      _
    // Predicated region
    $region54: #{tpu_custom_call.1} parent=1 // pred_check
      _
    $region55: #{tpu_custom_call.1} parent=1 // pred_check_branch
      %110 = sbr.rel (0) target = $region57
    $region56: #{tpu_custom_call.1} parent=1 // pred_region
      %111 = dma.done [#allocation13], 256
    $region57: #{tpu_custom_call.1} parent=1 // pred_fallthru
      _
    // Predicated region
    $region58: #{tpu_custom_call.1} parent=1 // pred_check
      _
    $region59: #{tpu_custom_call.1} parent=1 // pred_check_branch
      %113 = sbr.rel (0) target = $region61
    $region60: #{tpu_custom_call.1} parent=1 // pred_region
      %114 = dma.done [#allocation13], 8192
    $region61: #{tpu_custom_call.1} parent=1 // pred_fallthru
      _
    // Predicated region
    $region62: #{tpu_custom_call.1} parent=1 // pred_check
      _
    $region63: #{tpu_custom_call.1} parent=1 // pred_check_branch
      %116 = sbr.rel (0) target = $region65
    $region64: #{tpu_custom_call.1} parent=1 // pred_region
      %117 = dma.done [#allocation16], 2048
    $region65: #{tpu_custom_call.1} parent=1 // pred_fallthru
      _
    %118 = sfence
    %s120 = sld [smem:[#allocation8]]
    %s121 = sld [smem:[#allocation3]]
    %s122 = ssub.f32 %s120, %s121
    %s123 = sadd.f32 %s122, 0.0
    %s124 = sld [smem:[#allocation8 + $0x1]]
    %s125 = sld [smem:[#allocation3 + $0x1]]
    %s126 = ssub.f32 %s124, %s125
    %s127 = sadd.f32 %s123, %s126
    %v128 = vrcp.pop 2.0
    %s129 = vtos %v128
    %s130 = smul.f32 %s127, %s129
    %v131 = vld [vmem:[#allocation11] ss:$2 sm:$0xff]
    %v132 = vld [vmem:[#allocation12] ss:$2 sm:$0xff]
    %s133 = sld [smem:[#allocation9]]
    %v134 = vsub.f32 %v132, %v131
    %v135 = vstv %s133
    %v136 = vmul.f32 %v135, %v134
    %v137 = vadd.f32 %v131, %v136
    %138 = vst [vmem:[#allocation2] ss:$2 sm:$0xff] %v137
    %s139 = scalar_lea.vmem [#allocation11], 1
    %v140 = vld [vmem:[%s139] ss:$2 sm:$0xff]
    %s141 = scalar_lea.vmem [#allocation12], 1
    %v142 = vld [vmem:[%s141] ss:$2 sm:$0xff]
    %s143 = sld [smem:[#allocation9 + $0x1]]
    %v144 = vsub.f32 %v142, %v140
    %v145 = vstv %s143
    %v146 = vmul.f32 %v145, %v144
    %v147 = vadd.f32 %v140, %v146
    %s148 = scalar_lea.vmem [#allocation2], 1
    %149 = vst [vmem:[%s148] ss:$2 sm:$0xff] %v147
    %v150 = vld [vmem:[#allocation2] sm:$0xff]
    %v151 = vld [vmem:[#allocation2 + $0x8] sm:$0xff]
    %v154 = vcombine.high %v150, %v150
    %v156 = vunpack.c.l.s4 1983009808
    %v157 = vunpack.c.0.s8 %v156
    %v158 = vlaneseq
    %v159 = vshrl.u32 %v158, 7
    %v160 = vsub.s32 %v157, %v159
    %v161 = vrot.slane %v150, %v160
    %v163 = vunpack.c.l.s4 1983009808
    %v164 = vunpack.c.0.s8 %v163
    %v165 = vlaneseq
    %v166 = vshrl.u32 %v165, 7
    %v167 = vsub.s32 %v164, %v166
    %v168 = vrot.slane %v154, %v167
    %v169 = vcombine.high %v161, %v161
    %v170 = vcombine.high %v168, %v168
    %v171 = vcombine.high %v151, %v151
    %v173 = vunpack.c.l.s4 1983009808
    %v174 = vunpack.c.0.s8 %v173
    %v175 = vlaneseq
    %v176 = vshrl.u32 %v175, 7
    %v177 = vsub.s32 %v174, %v176
    %v178 = vrot.slane %v151, %v177
    %v180 = vunpack.c.l.s4 1983009808
    %v181 = vunpack.c.0.s8 %v180
    %v182 = vlaneseq
    %v183 = vshrl.u32 %v182, 7
    %v184 = vsub.s32 %v181, %v183
    %v185 = vrot.slane %v171, %v184
    %v186 = vcombine.high %v178, %v178
    %v187 = vcombine.high %v185, %v185
    %v196 = vpack.c.bf16 %v161, %v161
    %v197 = vpack.c.bf16 %v169, %v169
    %v198 = vpack.c.bf16 %v168, %v168
    %v199 = vpack.c.bf16 %v170, %v170
    %v200 = vpack.c.bf16 %v178, %v178
    %v201 = vpack.c.bf16 %v186, %v186
    %v202 = vpack.c.bf16 %v185, %v185
    %v203 = vpack.c.bf16 %v187, %v187
    %v204 = vld [vmem:[#allocation14] sm:$0xf]
    %v205 = vld [vmem:[#allocation14 + $0x4] sm:$0xf]
    %v206 = vld [vmem:[#allocation14 + $0x8] sm:$0xf]
    %v207 = vld [vmem:[#allocation14 + $0xc] sm:$0xf]
    %v208 = vld [vmem:[#allocation14 + $0x10] sm:$0xf]
    %v209 = vld [vmem:[#allocation14 + $0x14] sm:$0xf]
    %v210 = vld [vmem:[#allocation14 + $0x18] sm:$0xf]
    %v211 = vld [vmem:[#allocation14 + $0x1c] sm:$0xf]
    %v212 = vld [vmem:[#allocation14 + $0x20] sm:$0xf]
    %v213 = vld [vmem:[#allocation14 + $0x24] sm:$0xf]
    %v214 = vld [vmem:[#allocation14 + $0x28] sm:$0xf]
    %v215 = vld [vmem:[#allocation14 + $0x2c] sm:$0xf]
    %v216 = vld [vmem:[#allocation14 + $0x30] sm:$0xf]
    %v217 = vld [vmem:[#allocation14 + $0x34] sm:$0xf]
    %v218 = vld [vmem:[#allocation14 + $0x38] sm:$0xf]
    %v219 = vld [vmem:[#allocation14 + $0x3c] sm:$0xf]
    %v220 = vld [vmem:[#allocation14 + $0x40] sm:$0xf]
    %v221 = vld [vmem:[#allocation14 + $0x44] sm:$0xf]
    %v222 = vld [vmem:[#allocation14 + $0x48] sm:$0xf]
    %v223 = vld [vmem:[#allocation14 + $0x4c] sm:$0xf]
    %v224 = vld [vmem:[#allocation14 + $0x50] sm:$0xf]
    %v225 = vld [vmem:[#allocation14 + $0x54] sm:$0xf]
    %v226 = vld [vmem:[#allocation14 + $0x58] sm:$0xf]
    %v227 = vld [vmem:[#allocation14 + $0x5c] sm:$0xf]
    %v228 = vld [vmem:[#allocation14 + $0x60] sm:$0xf]
    %v229 = vld [vmem:[#allocation14 + $0x64] sm:$0xf]
    %v230 = vld [vmem:[#allocation14 + $0x68] sm:$0xf]
    %v231 = vld [vmem:[#allocation14 + $0x6c] sm:$0xf]
    %v232 = vld [vmem:[#allocation14 + $0x70] sm:$0xf]
    %v233 = vld [vmem:[#allocation14 + $0x74] sm:$0xf]
    %v234 = vld [vmem:[#allocation14 + $0x78] sm:$0xf]
    %v235 = vld [vmem:[#allocation14 + $0x7c] sm:$0xf]
    %v236 = vld [vmem:[#allocation14 + $0x80] sm:$0xf]
    %v237 = vld [vmem:[#allocation14 + $0x84] sm:$0xf]
    %v238 = vld [vmem:[#allocation14 + $0x88] sm:$0xf]
    %v239 = vld [vmem:[#allocation14 + $0x8c] sm:$0xf]
    %v240 = vld [vmem:[#allocation14 + $0x90] sm:$0xf]
    %v241 = vld [vmem:[#allocation14 + $0x94] sm:$0xf]
    %v242 = vld [vmem:[#allocation14 + $0x98] sm:$0xf]
    %v243 = vld [vmem:[#allocation14 + $0x9c] sm:$0xf]
    %v244 = vld [vmem:[#allocation14 + $0xa0] sm:$0xf]
    %v245 = vld [vmem:[#allocation14 + $0xa4] sm:$0xf]
    %v246 = vld [vmem:[#allocation14 + $0xa8] sm:$0xf]
    %v247 = vld [vmem:[#allocation14 + $0xac] sm:$0xf]
    %v248 = vld [vmem:[#allocation14 + $0xb0] sm:$0xf]
    %v249 = vld [vmem:[#allocation14 + $0xb4] sm:$0xf]
    %v250 = vld [vmem:[#allocation14 + $0xb8] sm:$0xf]
    %v251 = vld [vmem:[#allocation14 + $0xbc] sm:$0xf]
    %v252 = vld [vmem:[#allocation14 + $0xc0] sm:$0xf]
    %v253 = vld [vmem:[#allocation14 + $0xc4] sm:$0xf]
    %v254 = vld [vmem:[#allocation14 + $0xc8] sm:$0xf]
    %v255 = vld [vmem:[#allocation14 + $0xcc] sm:$0xf]
    %v256 = vld [vmem:[#allocation14 + $0xd0] sm:$0xf]
    %v257 = vld [vmem:[#allocation14 + $0xd4] sm:$0xf]
    %v258 = vld [vmem:[#allocation14 + $0xd8] sm:$0xf]
    %v259 = vld [vmem:[#allocation14 + $0xdc] sm:$0xf]
    %v260 = vld [vmem:[#allocation14 + $0xe0] sm:$0xf]
    %v261 = vld [vmem:[#allocation14 + $0xe4] sm:$0xf]
    %v262 = vld [vmem:[#allocation14 + $0xe8] sm:$0xf]
    %v263 = vld [vmem:[#allocation14 + $0xec] sm:$0xf]
    %v264 = vld [vmem:[#allocation14 + $0xf0] sm:$0xf]
    %v265 = vld [vmem:[#allocation14 + $0xf4] sm:$0xf]
    %v266 = vld [vmem:[#allocation14 + $0xf8] sm:$0xf]
    %v267 = vld [vmem:[#allocation14 + $0xfc] sm:$0xf]
    %v268 = vld [vmem:[#allocation14 + $0x100] sm:$0xf]
    %v269 = vld [vmem:[#allocation14 + $0x104] sm:$0xf]
    %v270 = vld [vmem:[#allocation14 + $0x108] sm:$0xf]
    %v271 = vld [vmem:[#allocation14 + $0x10c] sm:$0xf]
    %v272 = vld [vmem:[#allocation14 + $0x110] sm:$0xf]
    %v273 = vld [vmem:[#allocation14 + $0x114] sm:$0xf]
    %v274 = vld [vmem:[#allocation14 + $0x118] sm:$0xf]
    %v275 = vld [vmem:[#allocation14 + $0x11c] sm:$0xf]
    %v276 = vld [vmem:[#allocation14 + $0x120] sm:$0xf]
    %v277 = vld [vmem:[#allocation14 + $0x124] sm:$0xf]
    %v278 = vld [vmem:[#allocation14 + $0x128] sm:$0xf]
    %v279 = vld [vmem:[#allocation14 + $0x12c] sm:$0xf]
    %v280 = vld [vmem:[#allocation14 + $0x130] sm:$0xf]
    %v281 = vld [vmem:[#allocation14 + $0x134] sm:$0xf]
    %v282 = vld [vmem:[#allocation14 + $0x138] sm:$0xf]
    %v283 = vld [vmem:[#allocation14 + $0x13c] sm:$0xf]
    %v284 = vld [vmem:[#allocation14 + $0x140] sm:$0xf]
    %v285 = vld [vmem:[#allocation14 + $0x144] sm:$0xf]
    %v286 = vld [vmem:[#allocation14 + $0x148] sm:$0xf]
    %v287 = vld [vmem:[#allocation14 + $0x14c] sm:$0xf]
    %v288 = vld [vmem:[#allocation14 + $0x150] sm:$0xf]
    %v289 = vld [vmem:[#allocation14 + $0x154] sm:$0xf]
    %v290 = vld [vmem:[#allocation14 + $0x158] sm:$0xf]
    %v291 = vld [vmem:[#allocation14 + $0x15c] sm:$0xf]
    %v292 = vld [vmem:[#allocation14 + $0x160] sm:$0xf]
    %v293 = vld [vmem:[#allocation14 + $0x164] sm:$0xf]
    %v294 = vld [vmem:[#allocation14 + $0x168] sm:$0xf]
    %v295 = vld [vmem:[#allocation14 + $0x16c] sm:$0xf]
    %v296 = vld [vmem:[#allocation14 + $0x170] sm:$0xf]
    %v297 = vld [vmem:[#allocation14 + $0x174] sm:$0xf]
    %v298 = vld [vmem:[#allocation14 + $0x178] sm:$0xf]
    %v299 = vld [vmem:[#allocation14 + $0x17c] sm:$0xf]
    %v300 = vld [vmem:[#allocation14 + $0x180] sm:$0xf]
    %v301 = vld [vmem:[#allocation14 + $0x184] sm:$0xf]
    %v302 = vld [vmem:[#allocation14 + $0x188] sm:$0xf]
    %v303 = vld [vmem:[#allocation14 + $0x18c] sm:$0xf]
    %v304 = vld [vmem:[#allocation14 + $0x190] sm:$0xf]
    %v305 = vld [vmem:[#allocation14 + $0x194] sm:$0xf]
    %v306 = vld [vmem:[#allocation14 + $0x198] sm:$0xf]
    %v307 = vld [vmem:[#allocation14 + $0x19c] sm:$0xf]
    %v308 = vld [vmem:[#allocation14 + $0x1a0] sm:$0xf]
    %v309 = vld [vmem:[#allocation14 + $0x1a4] sm:$0xf]
    %v310 = vld [vmem:[#allocation14 + $0x1a8] sm:$0xf]
    %v311 = vld [vmem:[#allocation14 + $0x1ac] sm:$0xf]
    %v312 = vld [vmem:[#allocation14 + $0x1b0] sm:$0xf]
    %v313 = vld [vmem:[#allocation14 + $0x1b4] sm:$0xf]
    %v314 = vld [vmem:[#allocation14 + $0x1b8] sm:$0xf]
    %v315 = vld [vmem:[#allocation14 + $0x1bc] sm:$0xf]
    %v316 = vld [vmem:[#allocation14 + $0x1c0] sm:$0xf]
    %v317 = vld [vmem:[#allocation14 + $0x1c4] sm:$0xf]
    %v318 = vld [vmem:[#allocation14 + $0x1c8] sm:$0xf]
    %v319 = vld [vmem:[#allocation14 + $0x1cc] sm:$0xf]
    %v320 = vld [vmem:[#allocation14 + $0x1d0] sm:$0xf]
    %v321 = vld [vmem:[#allocation14 + $0x1d4] sm:$0xf]
    %v322 = vld [vmem:[#allocation14 + $0x1d8] sm:$0xf]
    %v323 = vld [vmem:[#allocation14 + $0x1dc] sm:$0xf]
    %v324 = vld [vmem:[#allocation14 + $0x1e0] sm:$0xf]
    %v325 = vld [vmem:[#allocation14 + $0x1e4] sm:$0xf]
    %v326 = vld [vmem:[#allocation14 + $0x1e8] sm:$0xf]
    %v327 = vld [vmem:[#allocation14 + $0x1ec] sm:$0xf]
    %v328 = vld [vmem:[#allocation14 + $0x1f0] sm:$0xf]
    %v329 = vld [vmem:[#allocation14 + $0x1f4] sm:$0xf]
    %v330 = vld [vmem:[#allocation14 + $0x1f8] sm:$0xf]
    %v331 = vld [vmem:[#allocation14 + $0x1fc] sm:$0xf]
    %v332 = vld [vmem:[%s6] sm:$0x1]
    %v334 = vlaneseq
    %v335 = vshrl.u32 %v334, 7
    %v336 = vsub.s32 0, %v335
    %v337 = vrot.slane %v332, %v336
    %v467 = vunpack.c.l.b16 %v204
    %v468 = vunpack.c.l.b16 %v205
    %v469 = vunpack.c.l.b16 %v206
    %v470 = vunpack.c.l.b16 %v207
    %v471 = vunpack.c.l.b16 %v208
    %v472 = vunpack.c.l.b16 %v209
    %v473 = vunpack.c.l.b16 %v210
    %v474 = vunpack.c.l.b16 %v211
    %v475 = vunpack.c.l.b16 %v212
    %v476 = vunpack.c.l.b16 %v213
    %v477 = vunpack.c.l.b16 %v214
    %v478 = vunpack.c.l.b16 %v215
    %v479 = vunpack.c.l.b16 %v216
    %v480 = vunpack.c.l.b16 %v217
    %v481 = vunpack.c.l.b16 %v218
    %v482 = vunpack.c.l.b16 %v219
    %v483 = vunpack.c.l.b16 %v220
    %v484 = vunpack.c.l.b16 %v221
    %v485 = vunpack.c.l.b16 %v222
    %v486 = vunpack.c.l.b16 %v223
    %v487 = vunpack.c.l.b16 %v224
    %v488 = vunpack.c.l.b16 %v225
    %v489 = vunpack.c.l.b16 %v226
    %v490 = vunpack.c.l.b16 %v227
    %v491 = vunpack.c.l.b16 %v228
    %v492 = vunpack.c.l.b16 %v229
    %v493 = vunpack.c.l.b16 %v230
    %v494 = vunpack.c.l.b16 %v231
    %v495 = vunpack.c.l.b16 %v232
    %v496 = vunpack.c.l.b16 %v233
    %v497 = vunpack.c.l.b16 %v234
    %v498 = vunpack.c.l.b16 %v235
    %v499 = vunpack.c.l.b16 %v236
    %v500 = vunpack.c.l.b16 %v237
    %v501 = vunpack.c.l.b16 %v238
    %v502 = vunpack.c.l.b16 %v239
    %v503 = vunpack.c.l.b16 %v240
    %v504 = vunpack.c.l.b16 %v241
    %v505 = vunpack.c.l.b16 %v242
    %v506 = vunpack.c.l.b16 %v243
    %v507 = vunpack.c.l.b16 %v244
    %v508 = vunpack.c.l.b16 %v245
    %v509 = vunpack.c.l.b16 %v246
    %v510 = vunpack.c.l.b16 %v247
    %v511 = vunpack.c.l.b16 %v248
    %v512 = vunpack.c.l.b16 %v249
    %v513 = vunpack.c.l.b16 %v250
    %v514 = vunpack.c.l.b16 %v251
    %v515 = vunpack.c.l.b16 %v252
    %v516 = vunpack.c.l.b16 %v253
    %v517 = vunpack.c.l.b16 %v254
    %v518 = vunpack.c.l.b16 %v255
    %v519 = vunpack.c.l.b16 %v256
    %v520 = vunpack.c.l.b16 %v257
    %v521 = vunpack.c.l.b16 %v258
    %v522 = vunpack.c.l.b16 %v259
    %v523 = vunpack.c.l.b16 %v260
    %v524 = vunpack.c.l.b16 %v261
    %v525 = vunpack.c.l.b16 %v262
    %v526 = vunpack.c.l.b16 %v263
    %v527 = vunpack.c.l.b16 %v264
    %v528 = vunpack.c.l.b16 %v265
    %v529 = vunpack.c.l.b16 %v266
    %v530 = vunpack.c.l.b16 %v267
    %v531 = vunpack.c.l.b16 %v268
    %v532 = vunpack.c.l.b16 %v269
    %v533 = vunpack.c.l.b16 %v270
    %v534 = vunpack.c.l.b16 %v271
    %v535 = vunpack.c.l.b16 %v272
    %v536 = vunpack.c.l.b16 %v273
    %v537 = vunpack.c.l.b16 %v274
    %v538 = vunpack.c.l.b16 %v275
    %v539 = vunpack.c.l.b16 %v276
    %v540 = vunpack.c.l.b16 %v277
    %v541 = vunpack.c.l.b16 %v278
    %v542 = vunpack.c.l.b16 %v279
    %v543 = vunpack.c.l.b16 %v280
    %v544 = vunpack.c.l.b16 %v281
    %v545 = vunpack.c.l.b16 %v282
    %v546 = vunpack.c.l.b16 %v283
    %v547 = vunpack.c.l.b16 %v284
    %v548 = vunpack.c.l.b16 %v285
    %v549 = vunpack.c.l.b16 %v286
    %v550 = vunpack.c.l.b16 %v287
    %v551 = vunpack.c.l.b16 %v288
    %v552 = vunpack.c.l.b16 %v289
    %v553 = vunpack.c.l.b16 %v290
    %v554 = vunpack.c.l.b16 %v291
    %v555 = vunpack.c.l.b16 %v292
    %v556 = vunpack.c.l.b16 %v293
    %v557 = vunpack.c.l.b16 %v294
    %v558 = vunpack.c.l.b16 %v295
    %v559 = vunpack.c.l.b16 %v296
    %v560 = vunpack.c.l.b16 %v297
    %v561 = vunpack.c.l.b16 %v298
    %v562 = vunpack.c.l.b16 %v299
    %v563 = vunpack.c.l.b16 %v300
    %v564 = vunpack.c.l.b16 %v301
    %v565 = vunpack.c.l.b16 %v302
    %v566 = vunpack.c.l.b16 %v303
    %v567 = vunpack.c.l.b16 %v304
    %v568 = vunpack.c.l.b16 %v305
    %v569 = vunpack.c.l.b16 %v306
    %v570 = vunpack.c.l.b16 %v307
    %v571 = vunpack.c.l.b16 %v308
    %v572 = vunpack.c.l.b16 %v309
    %v573 = vunpack.c.l.b16 %v310
    %v574 = vunpack.c.l.b16 %v311
    %v575 = vunpack.c.l.b16 %v312
    %v576 = vunpack.c.l.b16 %v313
    %v577 = vunpack.c.l.b16 %v314
    %v578 = vunpack.c.l.b16 %v315
    %v579 = vunpack.c.l.b16 %v316
    %v580 = vunpack.c.l.b16 %v317
    %v581 = vunpack.c.l.b16 %v318
    %v582 = vunpack.c.l.b16 %v319
    %v583 = vunpack.c.l.b16 %v320
    %v584 = vunpack.c.l.b16 %v321
    %v585 = vunpack.c.l.b16 %v322
    %v586 = vunpack.c.l.b16 %v323
    %v587 = vunpack.c.l.b16 %v324
    %v588 = vunpack.c.l.b16 %v325
    %v589 = vunpack.c.l.b16 %v326
    %v590 = vunpack.c.l.b16 %v327
    %v591 = vunpack.c.l.b16 %v328
    %v592 = vunpack.c.l.b16 %v329
    %v593 = vunpack.c.l.b16 %v330
    %v594 = vunpack.c.l.b16 %v331
    %v595 = vpack.c.b16 %v468, %v467
    %v596 = vpack.c.b16 %v470, %v469
    %v597 = vpack.c.b16 %v472, %v471
    %v598 = vpack.c.b16 %v474, %v473
    %v599 = vpack.c.b16 %v476, %v475
    %v600 = vpack.c.b16 %v478, %v477
    %v601 = vpack.c.b16 %v480, %v479
    %v602 = vpack.c.b16 %v482, %v481
    %v603 = vpack.c.b16 %v484, %v483
    %v604 = vpack.c.b16 %v486, %v485
    %v605 = vpack.c.b16 %v488, %v487
    %v606 = vpack.c.b16 %v490, %v489
    %v607 = vpack.c.b16 %v492, %v491
    %v608 = vpack.c.b16 %v494, %v493
    %v609 = vpack.c.b16 %v496, %v495
    %v610 = vpack.c.b16 %v498, %v497
    %v611 = vpack.c.b16 %v500, %v499
    %v612 = vpack.c.b16 %v502, %v501
    %v613 = vpack.c.b16 %v504, %v503
    %v614 = vpack.c.b16 %v506, %v505
    %v615 = vpack.c.b16 %v508, %v507
    %v616 = vpack.c.b16 %v510, %v509
    %v617 = vpack.c.b16 %v512, %v511
    %v618 = vpack.c.b16 %v514, %v513
    %v619 = vpack.c.b16 %v516, %v515
    %v620 = vpack.c.b16 %v518, %v517
    %v621 = vpack.c.b16 %v520, %v519
    %v622 = vpack.c.b16 %v522, %v521
    %v623 = vpack.c.b16 %v524, %v523
    %v624 = vpack.c.b16 %v526, %v525
    %v625 = vpack.c.b16 %v528, %v527
    %v626 = vpack.c.b16 %v530, %v529
    %v627 = vpack.c.b16 %v532, %v531
    %v628 = vpack.c.b16 %v534, %v533
    %v629 = vpack.c.b16 %v536, %v535
    %v630 = vpack.c.b16 %v538, %v537
    %v631 = vpack.c.b16 %v540, %v539
    %v632 = vpack.c.b16 %v542, %v541
    %v633 = vpack.c.b16 %v544, %v543
    %v634 = vpack.c.b16 %v546, %v545
    %v635 = vpack.c.b16 %v548, %v547
    %v636 = vpack.c.b16 %v550, %v549
    %v637 = vpack.c.b16 %v552, %v551
    %v638 = vpack.c.b16 %v554, %v553
    %v639 = vpack.c.b16 %v556, %v555
    %v640 = vpack.c.b16 %v558, %v557
    %v641 = vpack.c.b16 %v560, %v559
    %v642 = vpack.c.b16 %v562, %v561
    %v643 = vpack.c.b16 %v564, %v563
    %v644 = vpack.c.b16 %v566, %v565
    %v645 = vpack.c.b16 %v568, %v567
    %v646 = vpack.c.b16 %v570, %v569
    %v647 = vpack.c.b16 %v572, %v571
    %v648 = vpack.c.b16 %v574, %v573
    %v649 = vpack.c.b16 %v576, %v575
    %v650 = vpack.c.b16 %v578, %v577
    %v651 = vpack.c.b16 %v580, %v579
    %v652 = vpack.c.b16 %v582, %v581
    %v653 = vpack.c.b16 %v584, %v583
    %v654 = vpack.c.b16 %v586, %v585
    %v655 = vpack.c.b16 %v588, %v587
    %v656 = vpack.c.b16 %v590, %v589
    %v657 = vpack.c.b16 %v592, %v591
    %v658 = vpack.c.b16 %v594, %v593
    %723 = vmatprep.subr.bf16.mxu0 0
    %724 = vmatpush1.bf16.msra.mxu0 %v595
    %725 = vmatprep.subr.bf16.mxu0 0
    %726 = vmatpush1.bf16.msra.mxu0 %v596
    %727 = vmatprep.subr.bf16.mxu0 0
    %728 = vmatpush1.bf16.msra.mxu0 %v597
    %729 = vmatprep.subr.bf16.mxu0 0
    %730 = vmatpush1.bf16.msra.mxu0 %v598
    %731 = vmatprep.subr.bf16.mxu0 0
    %732 = vmatpush1.bf16.msra.mxu0 %v599
    %733 = vmatprep.subr.bf16.mxu0 0
    %734 = vmatpush1.bf16.msra.mxu0 %v600
    %735 = vmatprep.subr.bf16.mxu0 0
    %736 = vmatpush1.bf16.msra.mxu0 %v601
    %737 = vmatprep.subr.bf16.mxu0 0
    %738 = vmatpush1.bf16.msra.mxu0 %v602
    %739 = vmatprep.subr.bf16.mxu0 0
    %740 = vmatpush1.bf16.msra.mxu0 %v603
    %741 = vmatprep.subr.bf16.mxu0 0
    %742 = vmatpush1.bf16.msra.mxu0 %v604
    %743 = vmatprep.subr.bf16.mxu0 0
    %744 = vmatpush1.bf16.msra.mxu0 %v605
    %745 = vmatprep.subr.bf16.mxu0 0
    %746 = vmatpush1.bf16.msra.mxu0 %v606
    %747 = vmatprep.subr.bf16.mxu0 0
    %748 = vmatpush1.bf16.msra.mxu0 %v607
    %749 = vmatprep.subr.bf16.mxu0 0
    %750 = vmatpush1.bf16.msra.mxu0 %v608
    %751 = vmatprep.subr.bf16.mxu0 0
    %752 = vmatpush1.bf16.msra.mxu0 %v609
    %753 = vmatprep.subr.bf16.mxu0 0
    %754 = vmatpush1.bf16.msra.mxu0 %v610
    %755 = vmatprep.mubr.bf16.mxu0 %v197
    %756 = vmatmul.mubr.bf16.gmra.mrb[0].mxu0 %v196
    %v757 = vpop.f32.mrb[0].mxu0
    %v758 = vadd.f32 %v337, %v757
    %v759 = vpop.f32.mrb[0].mxu0
    %v760 = vpop.f32.mrb[0].mxu0
    %v761 = vpop.f32.mrb[0].mxu0
    %762 = vdwg.mxu0
    %763 = vmatprep.subr.bf16.mxu0 0
    %764 = vmatpush1.bf16.msra.mxu0 %v611
    %765 = vmatprep.subr.bf16.mxu0 0
    %766 = vmatpush1.bf16.msra.mxu0 %v612
    %767 = vmatprep.subr.bf16.mxu0 0
    %768 = vmatpush1.bf16.msra.mxu0 %v613
    %769 = vmatprep.subr.bf16.mxu0 0
    %770 = vmatpush1.bf16.msra.mxu0 %v614
    %771 = vmatprep.subr.bf16.mxu0 0
    %772 = vmatpush1.bf16.msra.mxu0 %v615
    %773 = vmatprep.subr.bf16.mxu0 0
    %774 = vmatpush1.bf16.msra.mxu0 %v616
    %775 = vmatprep.subr.bf16.mxu0 0
    %776 = vmatpush1.bf16.msra.mxu0 %v617
    %777 = vmatprep.subr.bf16.mxu0 0
    %778 = vmatpush1.bf16.msra.mxu0 %v618
    %779 = vmatprep.subr.bf16.mxu0 0
    %780 = vmatpush1.bf16.msra.mxu0 %v619
    %781 = vmatprep.subr.bf16.mxu0 0
    %782 = vmatpush1.bf16.msra.mxu0 %v620
    %783 = vmatprep.subr.bf16.mxu0 0
    %784 = vmatpush1.bf16.msra.mxu0 %v621
    %785 = vmatprep.subr.bf16.mxu0 0
    %786 = vmatpush1.bf16.msra.mxu0 %v622
    %787 = vmatprep.subr.bf16.mxu0 0
    %788 = vmatpush1.bf16.msra.mxu0 %v623
    %789 = vmatprep.subr.bf16.mxu0 0
    %790 = vmatpush1.bf16.msra.mxu0 %v624
    %791 = vmatprep.subr.bf16.mxu0 0
    %792 = vmatpush1.bf16.msra.mxu0 %v625
    %793 = vmatprep.subr.bf16.mxu0 0
    %794 = vmatpush1.bf16.msra.mxu0 %v626
    %795 = vmatprep.mubr.bf16.mxu0 %v199
    %796 = vmatmul.mubr.bf16.gmra.mrb[0].mxu0 %v198
    %v797 = vpop.f32.mrb[0].mxu0
    %v798 = vadd.f32 %v758, %v797
    %v799 = vpop.f32.mrb[0].mxu0
    %v800 = vpop.f32.mrb[0].mxu0
    %v801 = vpop.f32.mrb[0].mxu0
    %802 = vdwg.mxu0
    %803 = vmatprep.subr.bf16.mxu0 0
    %804 = vmatpush1.bf16.msra.mxu0 %v627
    %805 = vmatprep.subr.bf16.mxu0 0
    %806 = vmatpush1.bf16.msra.mxu0 %v628
    %807 = vmatprep.subr.bf16.mxu0 0
    %808 = vmatpush1.bf16.msra.mxu0 %v629
    %809 = vmatprep.subr.bf16.mxu0 0
    %810 = vmatpush1.bf16.msra.mxu0 %v630
    %811 = vmatprep.subr.bf16.mxu0 0
    %812 = vmatpush1.bf16.msra.mxu0 %v631
    %813 = vmatprep.subr.bf16.mxu0 0
    %814 = vmatpush1.bf16.msra.mxu0 %v632
    %815 = vmatprep.subr.bf16.mxu0 0
    %816 = vmatpush1.bf16.msra.mxu0 %v633
    %817 = vmatprep.subr.bf16.mxu0 0
    %818 = vmatpush1.bf16.msra.mxu0 %v634
    %819 = vmatprep.subr.bf16.mxu0 0
    %820 = vmatpush1.bf16.msra.mxu0 %v635
    %821 = vmatprep.subr.bf16.mxu0 0
    %822 = vmatpush1.bf16.msra.mxu0 %v636
    %823 = vmatprep.subr.bf16.mxu0 0
    %824 = vmatpush1.bf16.msra.mxu0 %v637
    %825 = vmatprep.subr.bf16.mxu0 0
    %826 = vmatpush1.bf16.msra.mxu0 %v638
    %827 = vmatprep.subr.bf16.mxu0 0
    %828 = vmatpush1.bf16.msra.mxu0 %v639
    %829 = vmatprep.subr.bf16.mxu0 0
    %830 = vmatpush1.bf16.msra.mxu0 %v640
    %831 = vmatprep.subr.bf16.mxu0 0
    %832 = vmatpush1.bf16.msra.mxu0 %v641
    %833 = vmatprep.subr.bf16.mxu0 0
    %834 = vmatpush1.bf16.msra.mxu0 %v642
    %835 = vmatprep.mubr.bf16.mxu0 %v201
    %836 = vmatmul.mubr.bf16.gmra.mrb[0].mxu0 %v200
    %v837 = vpop.f32.mrb[0].mxu0
    %v838 = vadd.f32 %v798, %v837
    %v839 = vpop.f32.mrb[0].mxu0
    %v840 = vpop.f32.mrb[0].mxu0
    %v841 = vpop.f32.mrb[0].mxu0
    %842 = vdwg.mxu0
    %843 = vmatprep.subr.bf16.mxu0 0
    %844 = vmatpush1.bf16.msra.mxu0 %v643
    %845 = vmatprep.subr.bf16.mxu0 0
    %846 = vmatpush1.bf16.msra.mxu0 %v644
    %847 = vmatprep.subr.bf16.mxu0 0
    %848 = vmatpush1.bf16.msra.mxu0 %v645
    %849 = vmatprep.subr.bf16.mxu0 0
    %850 = vmatpush1.bf16.msra.mxu0 %v646
    %851 = vmatprep.subr.bf16.mxu0 0
    %852 = vmatpush1.bf16.msra.mxu0 %v647
    %853 = vmatprep.subr.bf16.mxu0 0
    %854 = vmatpush1.bf16.msra.mxu0 %v648
    %855 = vmatprep.subr.bf16.mxu0 0
    %856 = vmatpush1.bf16.msra.mxu0 %v649
    %857 = vmatprep.subr.bf16.mxu0 0
    %858 = vmatpush1.bf16.msra.mxu0 %v650
    %859 = vmatprep.subr.bf16.mxu0 0
    %860 = vmatpush1.bf16.msra.mxu0 %v651
    %861 = vmatprep.subr.bf16.mxu0 0
    %862 = vmatpush1.bf16.msra.mxu0 %v652
    %863 = vmatprep.subr.bf16.mxu0 0
    %864 = vmatpush1.bf16.msra.mxu0 %v653
    %865 = vmatprep.subr.bf16.mxu0 0
    %866 = vmatpush1.bf16.msra.mxu0 %v654
    %867 = vmatprep.subr.bf16.mxu0 0
    %868 = vmatpush1.bf16.msra.mxu0 %v655
    %869 = vmatprep.subr.bf16.mxu0 0
    %870 = vmatpush1.bf16.msra.mxu0 %v656
    %871 = vmatprep.subr.bf16.mxu0 0
    %872 = vmatpush1.bf16.msra.mxu0 %v657
    %873 = vmatprep.subr.bf16.mxu0 0
    %874 = vmatpush1.bf16.msra.mxu0 %v658
    %875 = vmatprep.mubr.bf16.mxu0 %v203
    %876 = vmatmul.mubr.bf16.gmra.mrb[0].mxu0 %v202
    %v877 = vpop.f32.mrb[0].mxu0
    %v878 = vadd.f32 %v838, %v877
    %v879 = vpop.f32.mrb[0].mxu0
    %v880 = vpop.f32.mrb[0].mxu0
    %v881 = vpop.f32.mrb[0].mxu0
    %882 = vdwg.mxu0
    %v883 = vtanh.pop %v878
    %v884 = vmul.f32 %v883, %v883
    %v885 = vsub.f32 1.0, %v884
    %v886 = vld [vmem:[%s7] sm:$0x1]
    %v888 = vlaneseq
    %v889 = vshrl.u32 %v888, 7
    %v890 = vsub.s32 0, %v889
    %v891 = vrot.slane %v886, %v890
    %v893 = vmul.f32 %v885, %v891
    %v894 = vld [vmem:[#allocation15] sm:$0xff]
    %v895 = vld [vmem:[#allocation15 + $0x8] sm:$0xff]
    %v896 = vld [vmem:[#allocation15 + $0x10] sm:$0xff]
    %v897 = vld [vmem:[#allocation15 + $0x18] sm:$0xff]
    %v898 = vld [vmem:[#allocation15 + $0x20] sm:$0xff]
    %v899 = vld [vmem:[#allocation15 + $0x28] sm:$0xff]
    %v900 = vld [vmem:[#allocation15 + $0x30] sm:$0xff]
    %v901 = vld [vmem:[#allocation15 + $0x38] sm:$0xff]
    %v902 = vld [vmem:[#allocation15 + $0x40] sm:$0xff]
    %v903 = vld [vmem:[#allocation15 + $0x48] sm:$0xff]
    %v904 = vld [vmem:[#allocation15 + $0x50] sm:$0xff]
    %v905 = vld [vmem:[#allocation15 + $0x58] sm:$0xff]
    %v906 = vld [vmem:[#allocation15 + $0x60] sm:$0xff]
    %v907 = vld [vmem:[#allocation15 + $0x68] sm:$0xff]
    %v908 = vld [vmem:[#allocation15 + $0x70] sm:$0xff]
    %v909 = vld [vmem:[#allocation15 + $0x78] sm:$0xff]
    %910 = vmatprep.subr.mxu0 0.0
    %911 = vmatpush1.msra.mxu0 %v894
    %912 = vmatprep.subr.mxu0 0.0
    %913 = vmatpush1.msra.mxu0 %v895
    %914 = vmatprep.subr.mxu0 0.0
    %915 = vmatpush1.msra.mxu0 %v896
    %916 = vmatprep.subr.mxu0 0.0
    %917 = vmatpush1.msra.mxu0 %v897
    %918 = vmatprep.subr.mxu0 0.0
    %919 = vmatpush1.msra.mxu0 %v898
    %920 = vmatprep.subr.mxu0 0.0
    %921 = vmatpush1.msra.mxu0 %v899
    %922 = vmatprep.subr.mxu0 0.0
    %923 = vmatpush1.msra.mxu0 %v900
    %924 = vmatprep.subr.mxu0 0.0
    %925 = vmatpush1.msra.mxu0 %v901
    %926 = vmatprep.subr.mxu0 0.0
    %927 = vmatpush1.msra.mxu0 %v902
    %928 = vmatprep.subr.mxu0 0.0
    %929 = vmatpush1.msra.mxu0 %v903
    %930 = vmatprep.subr.mxu0 0.0
    %931 = vmatpush1.msra.mxu0 %v904
    %932 = vmatprep.subr.mxu0 0.0
    %933 = vmatpush1.msra.mxu0 %v905
    %934 = vmatprep.subr.mxu0 0.0
    %935 = vmatpush1.msra.mxu0 %v906
    %936 = vmatprep.subr.mxu0 0.0
    %937 = vmatpush1.msra.mxu0 %v907
    %938 = vmatprep.subr.mxu0 0.0
    %939 = vmatpush1.msra.mxu0 %v908
    %940 = vmatprep.subr.mxu0 0.0
    %941 = vmatpush1.msra.mxu0 %v909
    %942 = vmatprep.subr.mxu0 0.0
    %943 = vmatpush1.msra.mxu0 0.0
    %944 = vmatprep.subr.mxu0 0.0
    %945 = vmatpush1.msra.mxu0 0.0
    %946 = vmatprep.subr.mxu0 0.0
    %947 = vmatpush1.msra.mxu0 0.0
    %948 = vmatprep.subr.mxu0 0.0
    %949 = vmatpush1.msra.mxu0 0.0
    %950 = vmatprep.subr.mxu0 0.0
    %951 = vmatpush1.msra.mxu0 0.0
    %952 = vmatprep.subr.mxu0 0.0
    %953 = vmatpush1.msra.mxu0 0.0
    %954 = vmatprep.subr.mxu0 0.0
    %955 = vmatpush1.msra.mxu0 0.0
    %956 = vmatprep.subr.mxu0 0.0
    %957 = vmatpush1.msra.mxu0 0.0
    %958 = vmatprep.subr.mxu0 0.0
    %959 = vmatpush1.msra.mxu0 0.0
    %960 = vmatprep.subr.mxu0 0.0
    %961 = vmatpush1.msra.mxu0 0.0
    %962 = vmatprep.subr.mxu0 0.0
    %963 = vmatpush1.msra.mxu0 0.0
    %964 = vmatprep.subr.mxu0 0.0
    %965 = vmatpush1.msra.mxu0 0.0
    %966 = vmatprep.subr.mxu0 0.0
    %967 = vmatpush1.msra.mxu0 0.0
    %968 = vmatprep.subr.mxu0 0.0
    %969 = vmatpush1.msra.mxu0 0.0
    %970 = vmatprep.subr.mxu0 0.0
    %971 = vmatpush1.msra.mxu0 0.0
    %972 = vmatprep.subr.mxu0 0.0
    %973 = vmatpush1.msra.mxu0 0.0
    %974 = vmatprep.mubr.f32.mxu0 0.0
    %975 = vmatmul.mubr.f32.gmra.mrb[0].mxu0 %v893
    %v976 = vpop.f32.mrb[0].mxu0
    %v977 = vadd.f32 0.0, %v976
    %v978 = vpop.f32.mrb[0].mxu0
    %979 = vdwg.mxu0
    %v980 = vmul.f32 %v977, %v893
    %vm981 = vcmask 1041408
    %v982 = vsel %vm981, %v980, 0.0
    %983 = vadd.xlane.f32.xlu0 %v982
    %v984 = vpop.xlane.xlu0 %983
    %v985 = vrsqrt.pop %v984
    %v986 = vmul.f32 %v984, %v985
    %vm987 = vcmp.eq.f32.partialorder %v984, inf
    %v988 = vsel %vm987, %v984, %v986
    %vm989 = vcmp.eq.f32.partialorder %v984, 0.0
    %v990 = vand.u32 %v984, 2147483648
    %v991 = vsel %vm989, %v990, %v988
    %v992 = vsub.f32 %v991, 1.0
    %v993 = vmul.f32 %v992, %v992
    %vm994 = vcmask 1024
    %v995 = vsel %vm994, %v993, 0.0
    %996 = vadd.xlane.f32.xlu0 %v995
    %v997 = vpop.xlane.xlu0 %996
    %v998 = vrot.slane %v997, 4
    %v999 = vadd.f32 %v997, %v998
    %v1000 = vrot.slane %v999, 2
    %v1001 = vadd.f32 %v999, %v1000
    %v1002 = vrot.slane %v1001, 1
    %v1003 = vadd.f32 %v1001, %v1002
    %s1004 = vtos %v1003
    %v1005 = vrcp.pop 2.0
    %s1006 = vtos %v1005
    %s1007 = smul.f32 %s1004, %s1006
    %s1008 = smul.f32 %s1007, 10.0
    %s1009 = sadd.f32 %s130, %s1008
    %s1010 = scalar_lea.smem [#allocation17], 0
    %1011 = sst [smem:[%s1010]] %s1009
    // Predicated region
    $region66: #{tpu_custom_call.1} parent=1 // pred_check
      _
    $region67: #{tpu_custom_call.1} parent=1 // pred_check_branch
      %1013 = sbr.rel (0) target = $region69
    $region68: #{tpu_custom_call.1} parent=1 // pred_region
      %s1015 = ssub.s32 16, 16
      %1016 = vsyncadd [#allocation6], %s1015
      %1019 = dma.smem_to_hbm [#allocation17], 16, %s9, [#allocation6]
    $region69: #{tpu_custom_call.1} parent=1 // pred_fallthru
      _
    // Predicated region
    $region70: #{tpu_custom_call.1} parent=1 // pred_check
      _
    $region71: #{tpu_custom_call.1} parent=1 // pred_check_branch
      %1021 = sbr.rel (0) target = $region73
    $region72: #{tpu_custom_call.1} parent=1 // pred_region
      %1022 = dma.done [#allocation6], 16
    $region73: #{tpu_custom_call.1} parent=1 // pred_fallthru
      _
    %1023 = sfence
    %1024 = vsyncpa [#allocation4], 1
    %1025 = vsyncpa [#allocation13], 1
    %1026 = vsyncpa [#allocation16], 1
    %1027 = vsyncpa [#allocation5], 1
    %1028 = vsyncpa [#allocation6], 1
    %1029 = vsyncpa [#allocation7], 1
    %1030 = vsyncpa [#allocation10], 1

</llo_original>
